<compile_context>
chip_gen: v7x
topology: tpu7x:2x2x1
jax: 0.10.0
libtpu: 0.0.40
codegen_flags: <defaults>
</compile_context>

<pallas_src>
import functools

import numpy as np
import jax
import jax.numpy as jnp
from jax.experimental import pallas as pl
from jax.experimental.pallas import tpu as pltpu

# ----------------------------- model dims (small demo) -----------------------
DIM = 32          # DIM in the torch module (512 there, scaled down here)
DD = 10           # domain_dim
KALL = 11         # K_g_all == K_p_all
KTOP = 4          # K_g == K_p (top-k proxies)
LRELU_SLOPE = 0.01
EPS_SQ = 1e-24    # (F.normalize eps=1e-12)^2


def _round_up(x, m):
    return ((x + m - 1) // m) * m


DD_PAD = 128                                  # transform output padded to a full lane group
K_PAD = 16                                    # proxy count padded (11 -> 16) in the stats slab
GSIM_OFF = 0                                  # lane-aligned, D-parameterized stats slab layout
MEAN_OFF = 128
VAR_OFF = MEAN_OFF + _round_up(DIM, 128)
STATS_W = _round_up(VAR_OFF + DIM, 128)       # demo: 384; DIM=512: 1152
TS = 8                                        # sets per grid step in the stats kernel


# ============================== Pallas kernels ================================

def _stats_kernel(len_ref, feat_ref, wt_ref, bt_ref, proxnt_ref, out_ref):
    """TS sets per step: proxy-similarity sums + masked mean / two-pass variance,
    written into one lane-aligned STATS_W-wide slab per set."""
    feat = feat_ref[...]                                     # (TS, L, D)
    lens = len_ref[...]                                      # (TS, 1, 1) int32
    ts, L, D = feat.shape

    row = jax.lax.broadcasted_iota(jnp.int32, (ts, L, 1), 1)
    valid = row < lens                                       # (TS, L, 1)
    feat = jnp.where(valid, feat, 0.0)                       # sanitize padded rows
    validf = valid.astype(jnp.float32)

    # transform -> L2-normalize -> proxy similarities (DD padded with zero cols,
    # so row norms and similarities are unchanged).
    f2 = feat.reshape(ts * L, D)
    t = jnp.dot(f2, wt_ref[...], preferred_element_type=jnp.float32) + bt_ref[...]
    tn = t * jax.lax.rsqrt(jnp.maximum(jnp.sum(t * t, axis=-1, keepdims=True), EPS_SQ))
    sims = jnp.dot(tn, proxnt_ref[...], preferred_element_type=jnp.float32)
    sims = sims.reshape(ts, L, K_PAD)
    gsim = jnp.sum(jnp.where(valid, sims, 0.0), axis=1)      # (TS, K_PAD)

    inv_lp = 1.0 / jnp.maximum(lens[:, :, 0].astype(jnp.float32), 1.0)   # (TS, 1)
    mean = jnp.sum(feat, axis=1) * inv_lp                    # (TS, D)
    diff = (feat - mean[:, None, :]) * validf                # two-pass (stable)
    var = jnp.sum(diff * diff, axis=1) * inv_lp              # (TS, D) biased var

    out_ref[...] = jnp.zeros_like(out_ref)                   # deterministic pad lanes
    out_ref[:, GSIM_OFF:GSIM_OFF + K_PAD] = gsim             # aligned slab stores
    out_ref[:, MEAN_OFF:MEAN_OFF + D] = mean
    out_ref[:, VAR_OFF:VAR_OFF + D] = var


def _ctx_kernel(stats_ref, prox_ref, w1m_ref, w1v_ref, w1p_ref, b1_ref,
                w2_ref, b2_ref, w3_ref, b3_ref, out_ref):
    """Grid (KALL,): evaluate pooler MLP g for ALL sets at once.  bf16 weights are
    streamed from HBM exactly once; activations hit the MXU in bf16, accumulation
    and all elementwise math stay f32 (v5e-safe).  Dropout = identity (eval)."""
    D = DIM
    wdt = w1m_ref.dtype

    def lrelu(x):
        return jnp.where(x > 0, x, LRELU_SLOPE * x)

    mean = stats_ref[:, MEAN_OFF:MEAN_OFF + D]               # (S_pad, D) f32
    var = stats_ref[:, VAR_OFF:VAR_OFF + D]                  # (S_pad, D) f32
    prox = prox_ref[0]                                       # (1, D) f32

    # summary = [mean | var | proxy]; Linear1 split into three column groups so
    # no in-kernel concatenation / broadcast of the proxy row is needed.
    h = (jnp.dot(mean.astype(wdt), w1m_ref[0], preferred_element_type=jnp.float32)
         + jnp.dot(var.astype(wdt), w1v_ref[0], preferred_element_type=jnp.float32)
         + jnp.dot(prox.astype(wdt), w1p_ref[0], preferred_element_type=jnp.float32)
         + b1_ref[0])
    h = lrelu(h)                                             # (S_pad, 2D)
    h = lrelu(jnp.dot(h.astype(wdt), w2_ref[0],
                      preferred_element_type=jnp.float32) + b2_ref[0])
    ctx = lrelu(jnp.dot(h.astype(wdt), w3_ref[0],
                        preferred_element_type=jnp.float32) + b3_ref[0])   # (S_pad, D)
    out_ref[0] = ctx


def _fuse_kernel(use_probe_linear, len_ref, feat_ref, ctx_ref, wp_ref, bp_ref, out_ref):
    """Grid (S,): probe_linear + L2-normalize + masked softmax over the set rows
    against the KTOP pre-computed contexts, aggregation for all KTOP at once."""
    s = pl.program_id(0)
    lp = len_ref[s]

    feat = feat_ref[0]                                       # (L, D)
    L, D = feat.shape
    row = jax.lax.broadcasted_iota(jnp.int32, (L, 1), 0)
    valid = row < lp
    f = jnp.where(valid, feat, 0.0)                          # garbage-padding safe

    if use_probe_linear:
        q = jnp.dot(f, wp_ref[...], preferred_element_type=jnp.float32) + bp_ref[...]
    else:
        q = f
    normed = f * jax.lax.rsqrt(jnp.maximum(jnp.sum(f * f, axis=-1, keepdims=True), EPS_SQ))

    ctx = ctx_ref[0]                                         # (KTOP, D) f32
    scores = jax.lax.dot_general(q, ctx, (((1,), (1,)), ((), ())),
                                 preferred_element_type=jnp.float32)   # (L, KTOP)
    scores = jnp.where(valid, scores, jnp.float32(-1e30))    # masked softmax (temp 1.0)
    m = jnp.max(scores, axis=0, keepdims=True)
    e = jnp.exp(scores - m)
    denom = jnp.sum(e, axis=0, keepdims=True)
    r = pl.reciprocal(denom, approx=True)                    # EUP slot
    r = r * (2.0 - denom * r)                                # one Newton step -> f32-accurate
    w = e * r                                                # (L, KTOP)

    agg = jax.lax.dot_general(w, normed, (((0,), (0,)), ((), ())),
                              preferred_element_type=jnp.float32)      # (KTOP, D)
    out_ref[0] = agg


# ============================== Pallas wrappers ===============================

def stats_and_sims(feats_pad, lens_pad, wt_pad, bt_pad, proxn_pad, ts):
    S_pad, L, D = feats_pad.shape
    grid_spec = pltpu.PrefetchScalarGridSpec(
        num_scalar_prefetch=0,
        grid=(S_pad // ts,),
        in_specs=[
            pl.BlockSpec((ts, 1, 1), lambda i: (i, 0, 0)),
            pl.BlockSpec((ts, L, D), lambda i: (i, 0, 0)),
            pl.BlockSpec((D, DD_PAD), lambda i: (0, 0)),
            pl.BlockSpec((1, DD_PAD), lambda i: (0, 0)),
            pl.BlockSpec((DD_PAD, K_PAD), lambda i: (0, 0)),
        ],
        out_specs=pl.BlockSpec((ts, STATS_W), lambda i: (i, 0)),
    )
    return pl.pallas_call(
        _stats_kernel,
        grid_spec=grid_spec,
        out_shape=jax.ShapeDtypeStruct((S_pad, STATS_W), jnp.float32),
        compiler_params=pltpu.CompilerParams(dimension_semantics=("parallel",)),
    )(lens_pad, feats_pad, wt_pad, bt_pad, proxn_pad)


def pooler_contexts(stats, prox_r, w1m_t, w1v_t, w1p_t, b1_r, w2_t, b2_r, w3_t, b3_r):
    S_pad = stats.shape[0]
    D = DIM
    grid_spec = pltpu.PrefetchScalarGridSpec(
        num_scalar_prefetch=0,
        grid=(KALL,),
        in_specs=[
            pl.BlockSpec((S_pad, STATS_W), lambda g: (0, 0)),
            pl.BlockSpec((1, 1, D), lambda g: (g, 0, 0)),
            pl.BlockSpec((1, D, 2 * D), lambda g: (g, 0, 0)),
            pl.BlockSpec((1, D, 2 * D), lambda g: (g, 0, 0)),
            pl.BlockSpec((1, D, 2 * D), lambda g: (g, 0, 0)),
            pl.BlockSpec((1, 1, 2 * D), lambda g: (g, 0, 0)),
            pl.BlockSpec((1, 2 * D, 2 * D), lambda g: (g, 0, 0)),
            pl.BlockSpec((1, 1, 2 * D), lambda g: (g, 0, 0)),
            pl.BlockSpec((1, 2 * D, D), lambda g: (g, 0, 0)),
            pl.BlockSpec((1, 1, D), lambda g: (g, 0, 0)),
        ],
        out_specs=pl.BlockSpec((1, S_pad, D), lambda g: (g, 0, 0)),
    )
    return pl.pallas_call(
        _ctx_kernel,
        grid_spec=grid_spec,
        out_shape=jax.ShapeDtypeStruct((KALL, S_pad, D), jnp.float32),
        compiler_params=pltpu.CompilerParams(
            dimension_semantics=("parallel",),
            vmem_limit_bytes=32 * 1024 * 1024),   # v5e headroom at DIM=512; no-op on v6e/v7x
    )(stats, prox_r, w1m_t, w1v_t, w1p_t, b1_r, w2_t, b2_r, w3_t, b3_r)


def fuse(feats, lengths, ctx_sel, wp_t, bp_r, use_probe_linear):
    S, L, D = feats.shape
    grid_spec = pltpu.PrefetchScalarGridSpec(
        num_scalar_prefetch=1,          # lengths -> SMEM scalars
        grid=(S,),
        in_specs=[
            pl.BlockSpec((1, L, D), lambda s, lens: (s, 0, 0)),
            pl.BlockSpec((1, KTOP, D), lambda s, lens: (s, 0, 0)),
            pl.BlockSpec((D, D), lambda s, lens: (0, 0)),
            pl.BlockSpec((1, D), lambda s, lens: (0, 0)),
        ],
        out_specs=pl.BlockSpec((1, KTOP, D), lambda s, lens: (s, 0, 0)),
    )
    return pl.pallas_call(
        functools.partial(_fuse_kernel, use_probe_linear),
        grid_spec=grid_spec,
        out_shape=jax.ShapeDtypeStruct((S, KTOP, D), jnp.float32),
        compiler_params=pltpu.CompilerParams(dimension_semantics=("parallel",)),
    )(lengths, feats, ctx_sel, wp_t, bp_r)


# ============================== model glue ====================================

def pallas_attention_fuse(feats, lengths, proxies, use_probe_linear, p, ts=TS):
    """attention_probes / attention_gallery, batched over sets (padded + masked)."""
    S, L, D = feats.shape
    lengths = lengths.astype(jnp.int32)

    # layout-friendly padded transform params (zero columns -> identical math)
    wt_t = p['transform_w'].T                                            # (D, DD)
    wt_pad = jnp.zeros((D, DD_PAD), jnp.float32).at[:, :DD].set(wt_t)
    bt_pad = jnp.zeros((1, DD_PAD), jnp.float32).at[:, :DD].set(p['transform_b'])

    # tiny glue: transform + normalize the 11 proxies once (true DD), then pad.
    tp = proxies @ wt_t + p['transform_b']                               # (KALL, DD)
    tpn = tp / jnp.maximum(jnp.linalg.norm(tp, axis=-1, keepdims=True), 1e-12)
    proxn_pad = jnp.zeros((DD_PAD, K_PAD), jnp.float32).at[:DD, :KALL].set(tpn.T)

    # pad the set axis to a multiple of the stats kernel's per-step set batch
    S_pad = _round_up(S, ts)
    feats_pad = jnp.pad(feats, ((0, S_pad - S), (0, 0), (0, 0)))
    lens_pad = jnp.pad(lengths, (0, S_pad - S), constant_values=1).reshape(S_pad, 1, 1)

    stats = stats_and_sims(feats_pad, lens_pad, wt_pad, bt_pad, proxn_pad, ts)
    gsims = stats[:S, GSIM_OFF:GSIM_OFF + KALL]
    _, top_idx = jax.lax.top_k(gsims, KTOP)                              # (S, KTOP)

    # one batched pass over all 11 pooler MLPs: each bf16 weight matrix is read
    # from HBM exactly once and the MXU sees M=S_pad rows.  Linear1 is split by
    # summary segment ([mean | var | proxy]) -> no in-kernel concat needed.
    w1m_t = jnp.swapaxes(p['w1'][:, :, 0 * D:1 * D], 1, 2).astype(jnp.bfloat16)
    w1v_t = jnp.swapaxes(p['w1'][:, :, 1 * D:2 * D], 1, 2).astype(jnp.bfloat16)
    w1p_t = jnp.swapaxes(p['w1'][:, :, 2 * D:3 * D], 1, 2).astype(jnp.bfloat16)
    w2_t = jnp.swapaxes(p['w2'], 1, 2).astype(jnp.bfloat16)
    w3_t = jnp.swapaxes(p['w3'], 1, 2).astype(jnp.bfloat16)
    ctx_all = pooler_contexts(stats, proxies[:, None, :],
                              w1m_t, w1v_t, w1p_t, p['b1'][:, None, :],
                              w2_t, p['b2'][:, None, :],
                              w3_t, p['b3'][:, None, :])                 # (KALL, S_pad, D)

    # tiny host-side gather of the selected contexts -> (S, KTOP, D)
    ctx_sel = jnp.take_along_axis(jnp.swapaxes(ctx_all[:, :S, :], 0, 1),
                                  top_idx[:, :, None], axis=1)

    return fuse(feats, lengths, ctx_sel,
                p['probe_w'].T, p['probe_b'][None, :], use_probe_linear)


def proxy_fusion_forward(probes, gallery, probe_lengths, gallery_lengths, p):
    probes = probes[0]
    gallery = gallery[0]
    probe_lengths = probe_lengths[0]
    gallery_lengths = gallery_lengths[0]

    probe_feats = pallas_attention_fuse(probes, probe_lengths, p['proxies_p'], True, p)
    gallery_feats = pallas_attention_fuse(gallery, gallery_lengths, p['proxies_g'], False, p)

    tr_p = p['proxies_p'] @ p['transform_w'].T + p['transform_b']
    tr_g = p['proxies_g'] @ p['transform_w'].T + p['transform_b']
    return probe_feats, tr_p, gallery_feats, tr_g


def init_params(key):
    ks = jax.random.split(key, 8)
    return dict(
        # nn.Linear(DIM, domain_dim) with kaiming_normal_(fan_out)
        transform_w=jax.random.normal(ks[0], (DD, DIM), jnp.float32) * np.sqrt(2.0 / DD),
        transform_b=(jax.random.uniform(ks[1], (DD,), jnp.float32) * 2.0 - 1.0) / np.sqrt(DIM),
        # proxies, kaiming_normal_(fan_out)
        proxies_p=jax.random.normal(ks[2], (KALL, DIM), jnp.float32) * np.sqrt(2.0 / KALL),
        proxies_g=jax.random.normal(ks[3], (KALL, DIM), jnp.float32) * np.sqrt(2.0 / KALL),
        # 11 pooler MLPs: init_weights -> N(0, 0.001) weights, zero biases
        w1=0.001 * jax.random.normal(ks[4], (KALL, 2 * DIM, 3 * DIM), jnp.float32),
        b1=jnp.zeros((KALL, 2 * DIM), jnp.float32),
        w2=0.001 * jax.random.normal(ks[5], (KALL, 2 * DIM, 2 * DIM), jnp.float32),
        b2=jnp.zeros((KALL, 2 * DIM), jnp.float32),
        w3=0.001 * jax.random.normal(ks[6], (KALL, DIM, 2 * DIM), jnp.float32),
        b3=jnp.zeros((KALL, DIM), jnp.float32),
        # probe_linear: identity weight, zero bias
        probe_w=jnp.eye(DIM, dtype=jnp.float32),
        probe_b=jnp.zeros((DIM,), jnp.float32),
    )


# ============================== pure-JAX reference ============================

def ref_attention(feat, proxies, p, use_probe_linear):
    """Unpadded single-set f32 reference matching the torch code (eval mode)."""
    def lrelu(x):
        return jnp.where(x > 0, x, LRELU_SLOPE * x)

    normed = feat / jnp.maximum(jnp.linalg.norm(feat, axis=-1, keepdims=True), 1e-12)
    tf = feat @ p['transform_w'].T + p['transform_b']
    tp = proxies @ p['transform_w'].T + p['transform_b']
    tf = tf / jnp.maximum(jnp.linalg.norm(tf, axis=-1, keepdims=True), 1e-12)
    tp = tp / jnp.maximum(jnp.linalg.norm(tp, axis=-1, keepdims=True), 1e-12)
    sims = tf @ tp.T
    _, top_idx = jax.lax.top_k(sims.sum(0), KTOP)

    mean = feat.mean(0)
    var = jnp.mean((feat - mean) ** 2, axis=0)               # unbiased=False
    ctxs = []
    for i in top_idx:
        sv = jnp.concatenate([mean, var, proxies[i]])
        h = lrelu(p['w1'][i] @ sv + p['b1'][i])
        h = lrelu(p['w2'][i] @ h + p['b2'][i])
        h = lrelu(p['w3'][i] @ h + p['b3'][i])
        ctxs.append(h)
    ctx = jnp.stack(ctxs)                                     # (KTOP, D)

    q = feat @ p['probe_w'].T + p['probe_b'] if use_probe_linear else feat
    scores = q @ ctx.T
    w = jax.nn.softmax(scores, axis=0)
    agg = jnp.sum(normed[:, :, None] * w[:, None, :], axis=0)   # (D, KTOP)
    return agg.T                                                 # (KTOP, D)


# ============================== demo / test ===================================

if __name__ == "__main__":
    # TODO(synk): nn.Dropout(p=0.7) is stochastic in train mode; implemented as
    # eval-mode identity (deterministic kernel).
    key = jax.random.PRNGKey(0)
    k1, k2 = jax.random.split(key, 2)

    S_P, S_G, L = 2, 3, 8
    probes = jax.random.normal(k1, (1, S_P, L, DIM), jnp.float32)
    gallery = jax.random.normal(k2, (1, S_G, L, DIM), jnp.float32)
    probe_lengths = jnp.array([[5, 8]], jnp.int32)
    gallery_lengths = jnp.array([[8, 3, 6]], jnp.int32)

    params = init_params(jax.random.PRNGKey(42))

    outs = proxy_fusion_forward(probes, gallery, probe_lengths, gallery_lengths, params)
    outs = jax.block_until_ready(outs)
    pf, tr_p, gf, tr_g = outs

    assert pf.shape == (S_P, KTOP, DIM)
    assert gf.shape == (S_G, KTOP, DIM)
    assert tr_p.shape == (KALL, DD) and tr_g.shape == (KALL, DD)

    # correctness check against a plain-JAX reference of the torch forward
    for i in range(S_P):
        lp = int(probe_lengths[0, i])
        ref = ref_attention(probes[0, i, :lp], params['proxies_p'], params, True)
        np.testing.assert_allclose(np.asarray(pf[i]), np.asarray(ref), rtol=1e-3, atol=2e-4)
    for i in range(S_G):
        lg = int(gallery_lengths[0, i])
        ref = ref_attention(gallery[0, i, :lg], params['proxies_g'], params, False)
        np.testing.assert_allclose(np.asarray(gf[i]), np.asarray(ref), rtol=1e-3, atol=2e-4)

    print("KERNEL_OK")
</pallas_src>

<mosaic_0001>
module attributes {stable_mosaic.version = 11 : i64} {
  func.func @_stats_kernel(%arg0: i32, %arg1: memref<8x1x1xi32, #tpu.memory_space<vmem>>, %arg2: memref<8x8x32xf32, #tpu.memory_space<vmem>>, %arg3: memref<32x128xf32, #tpu.memory_space<vmem>>, %arg4: memref<1x128xf32, #tpu.memory_space<vmem>>, %arg5: memref<128x16xf32, #tpu.memory_space<vmem>>, %arg6: memref<8x384xf32, #tpu.memory_space<vmem>>) attributes {dimension_semantics = [#tpu.dimension_semantics<parallel>], iteration_bounds = array<i64: 1>, scalar_prefetch = 0 : i64, scratch_operands = 0 : i64, tpu.core_type = #tpu.core_type<tc>, window_params = [{transform_indices = @transform_0, window_bounds = array<i64: 8, 1, 1>}, {transform_indices = @transform_1, window_bounds = array<i64: 8, 8, 32>}, {pipeline_mode = #tpu.pipeline_mode<synchronous>, transform_indices = @transform_2, window_bounds = array<i64: 32, 128>}, {pipeline_mode = #tpu.pipeline_mode<synchronous>, transform_indices = @transform_3, window_bounds = array<i64: 1, 128>}, {pipeline_mode = #tpu.pipeline_mode<synchronous>, transform_indices = @transform_4, window_bounds = array<i64: 128, 16>}, {transform_indices = @transform_5, window_bounds = array<i64: 8, 384>}]} {
    %c0 = arith.constant 0 : index
    %c0_0 = arith.constant 0 : index
    %c0_1 = arith.constant 0 : index
    %0 = vector.load %arg2[%c0, %c0_0, %c0_1] : memref<8x8x32xf32, #tpu.memory_space<vmem>>, vector<8x8x32xf32>
    %c0_2 = arith.constant 0 : index
    %c0_3 = arith.constant 0 : index
    %c0_4 = arith.constant 0 : index
    %1 = vector.load %arg1[%c0_2, %c0_3, %c0_4] : memref<8x1x1xi32, #tpu.memory_space<vmem>>, vector<8x1x1xi32>
    %2 = tpu.iota {dimensions = array<i32: 1>} : vector<8x8x1xi32>
    %3 = vector.broadcast %1 : vector<8x1x1xi32> to vector<8x8x1xi32>
    %4 = arith.cmpi slt, %2, %3 : vector<8x8x1xi32>
    %cst = arith.constant 0.000000e+00 : f32
    %5 = vector.shape_cast %4 : vector<8x8x1xi1> to vector<8x8x1xi1>
    %6 = vector.broadcast %5 : vector<8x8x1xi1> to vector<8x8x32xi1>
    %7 = vector.broadcast %cst : f32 to vector<8x8x32xf32>
    %8 = arith.select %6, %0, %7 : vector<8x8x32xi1>, vector<8x8x32xf32>
    %9 = arith.extui %4 : vector<8x8x1xi1> to vector<8x8x1xi32>
    %10 = arith.sitofp %9 : vector<8x8x1xi32> to vector<8x8x1xf32>
    %11 = vector.shape_cast %8 : vector<8x8x32xf32> to vector<64x32xf32>
    %c0_5 = arith.constant 0 : index
    %c0_6 = arith.constant 0 : index
    %12 = vector.load %arg3[%c0_5, %c0_6] : memref<32x128xf32, #tpu.memory_space<vmem>>, vector<32x128xf32>
    %cst_7 = arith.constant dense<0.000000e+00> : vector<64x128xf32>
    %13 = tpu.matmul %11, %12, %cst_7 {dimension_numbers = #tpu.dot_dimension_numbers<[1], [0], [0], [1], [0, 0, 1, 1], [], []>} : vector<64x32xf32>, vector<32x128xf32>, vector<64x128xf32> -> vector<64x128xf32>
    %c0_8 = arith.constant 0 : index
    %c0_9 = arith.constant 0 : index
    %14 = vector.load %arg4[%c0_8, %c0_9] : memref<1x128xf32, #tpu.memory_space<vmem>>, vector<1x128xf32>
    %15 = vector.broadcast %14 : vector<1x128xf32> to vector<64x128xf32>
    %16 = arith.addf %13, %15 : vector<64x128xf32>
    %17 = arith.mulf %16, %16 : vector<64x128xf32>
    %cst_10 = arith.constant dense<0.000000e+00> : vector<64xf32>
    %18 = vector.multi_reduction <add>, %17, %cst_10 [1] : vector<64x128xf32> to vector<64xf32>
    %19 = vector.shape_cast %18 : vector<64xf32> to vector<64x1xf32>
    %cst_11 = arith.constant 1.000000e-24 : f32
    %20 = vector.broadcast %cst_11 : f32 to vector<64x1xf32>
    %21 = arith.maximumf %19, %20 : vector<64x1xf32>
    %22 = math.rsqrt %21 : vector<64x1xf32>
    %23 = vector.broadcast %22 : vector<64x1xf32> to vector<64x128xf32>
    %24 = arith.mulf %16, %23 : vector<64x128xf32>
    %c0_12 = arith.constant 0 : index
    %c0_13 = arith.constant 0 : index
    %25 = vector.load %arg5[%c0_12, %c0_13] : memref<128x16xf32, #tpu.memory_space<vmem>>, vector<128x16xf32>
    %cst_14 = arith.constant dense<0.000000e+00> : vector<64x16xf32>
    %26 = tpu.matmul %24, %25, %cst_14 {dimension_numbers = #tpu.dot_dimension_numbers<[1], [0], [0], [1], [0, 0, 1, 1], [], []>} : vector<64x128xf32>, vector<128x16xf32>, vector<64x16xf32> -> vector<64x16xf32>
    %27 = vector.shape_cast %26 : vector<64x16xf32> to vector<8x8x16xf32>
    %cst_15 = arith.constant 0.000000e+00 : f32
    %28 = vector.shape_cast %4 : vector<8x8x1xi1> to vector<8x8x1xi1>
    %29 = vector.broadcast %28 : vector<8x8x1xi1> to vector<8x8x16xi1>
    %30 = vector.broadcast %cst_15 : f32 to vector<8x8x16xf32>
    %31 = arith.select %29, %27, %30 : vector<8x8x16xi1>, vector<8x8x16xf32>
    %cst_16 = arith.constant dense<0.000000e+00> : vector<8x16xf32>
    %32 = vector.multi_reduction <add>, %31, %cst_16 [1] : vector<8x8x16xf32> to vector<8x16xf32>
    %33 = vector.shape_cast %1 : vector<8x1x1xi32> to vector<8x1xi32>
    %34 = arith.sitofp %33 : vector<8x1xi32> to vector<8x1xf32>
    %cst_17 = arith.constant 1.000000e+00 : f32
    %35 = vector.broadcast %cst_17 : f32 to vector<8x1xf32>
    %36 = arith.maximumf %34, %35 : vector<8x1xf32>
    %cst_18 = arith.constant 1.000000e+00 : f32
    %37 = vector.broadcast %cst_18 : f32 to vector<8x1xf32>
    %38 = arith.divf %37, %36 : vector<8x1xf32>
    %cst_19 = arith.constant dense<0.000000e+00> : vector<8x32xf32>
    %39 = vector.multi_reduction <add>, %8, %cst_19 [1] : vector<8x8x32xf32> to vector<8x32xf32>
    %40 = vector.broadcast %38 : vector<8x1xf32> to vector<8x32xf32>
    %41 = arith.mulf %39, %40 : vector<8x32xf32>
    %42 = vector.shape_cast %41 : vector<8x32xf32> to vector<8x1x32xf32>
    %43 = vector.broadcast %42 : vector<8x1x32xf32> to vector<8x8x32xf32>
    %44 = arith.subf %8, %43 : vector<8x8x32xf32>
    %45 = vector.broadcast %10 : vector<8x8x1xf32> to vector<8x8x32xf32>
    %46 = arith.mulf %44, %45 : vector<8x8x32xf32>
    %47 = arith.mulf %46, %46 : vector<8x8x32xf32>
    %cst_20 = arith.constant dense<0.000000e+00> : vector<8x32xf32>
    %48 = vector.multi_reduction <add>, %47, %cst_20 [1] : vector<8x8x32xf32> to vector<8x32xf32>
    %49 = vector.broadcast %38 : vector<8x1xf32> to vector<8x32xf32>
    %50 = arith.mulf %48, %49 : vector<8x32xf32>
    %cst_21 = arith.constant 0.000000e+00 : f32
    %51 = vector.broadcast %cst_21 : f32 to vector<8x384xf32>
    %c0_22 = arith.constant 0 : index
    %c0_23 = arith.constant 0 : index
    %52 = vector.load %arg6[%c0_22, %c0_23] : memref<8x384xf32, #tpu.memory_space<vmem>>, vector<8x384xf32>
    tpu.vector_store %arg6[%c0_22, %c0_23], %51 {strides = array<i32>} : memref<8x384xf32, #tpu.memory_space<vmem>>, vector<8x384xf32>,
    %c0_24 = arith.constant 0 : index
    %c0_25 = arith.constant 0 : index
    %53 = vector.load %arg6[%c0_24, %c0_25] : memref<8x384xf32, #tpu.memory_space<vmem>>, vector<8x16xf32>
    tpu.vector_store %arg6[%c0_24, %c0_25], %32 {strides = array<i32>} : memref<8x384xf32, #tpu.memory_space<vmem>>, vector<8x16xf32>,
    %c0_26 = arith.constant 0 : index
    %c128 = arith.constant 128 : index
    %54 = vector.load %arg6[%c0_26, %c128] : memref<8x384xf32, #tpu.memory_space<vmem>>, vector<8x32xf32>
    tpu.vector_store %arg6[%c0_26, %c128], %41 {strides = array<i32>} : memref<8x384xf32, #tpu.memory_space<vmem>>, vector<8x32xf32>,
    %c0_27 = arith.constant 0 : index
    %c256 = arith.constant 256 : index
    %55 = vector.load %arg6[%c0_27, %c256] : memref<8x384xf32, #tpu.memory_space<vmem>>, vector<8x32xf32>
    tpu.vector_store %arg6[%c0_27, %c256], %50 {strides = array<i32>} : memref<8x384xf32, #tpu.memory_space<vmem>>, vector<8x32xf32>,
    return
  }
  func.func @transform_0(%arg0: i32) -> (i32, i32, i32) {
    %c0_i32 = arith.constant 0 : i32
    %c0_i32_0 = arith.constant 0 : i32
    %c0_i32_1 = arith.constant 0 : i32
    return %arg0, %c0_i32, %c0_i32_0 : i32, i32, i32
  }
  func.func @transform_1(%arg0: i32) -> (i32, i32, i32) {
    %c0_i32 = arith.constant 0 : i32
    %c0_i32_0 = arith.constant 0 : i32
    %c0_i32_1 = arith.constant 0 : i32
    return %arg0, %c0_i32, %c0_i32_0 : i32, i32, i32
  }
  func.func @transform_2(%arg0: i32) -> (i32, i32) {
    %c0_i32 = arith.constant 0 : i32
    %c0_i32_0 = arith.constant 0 : i32
    %c0_i32_1 = arith.constant 0 : i32
    return %c0_i32, %c0_i32_0 : i32, i32
  }
  func.func @transform_3(%arg0: i32) -> (i32, i32) {
    %c0_i32 = arith.constant 0 : i32
    %c0_i32_0 = arith.constant 0 : i32
    %c0_i32_1 = arith.constant 0 : i32
    return %c0_i32, %c0_i32_0 : i32, i32
  }
  func.func @transform_4(%arg0: i32) -> (i32, i32) {
    %c0_i32 = arith.constant 0 : i32
    %c0_i32_0 = arith.constant 0 : i32
    %c0_i32_1 = arith.constant 0 : i32
    return %c0_i32, %c0_i32_0 : i32, i32
  }
  func.func @transform_5(%arg0: i32) -> (i32, i32) {
    %c0_i32 = arith.constant 0 : i32
    %c0_i32_0 = arith.constant 0 : i32
    return %arg0, %c0_i32 : i32, i32
  }
}

</mosaic_0001>

<llo_original>
// kernel: tpu_custom_call.1
$region0: #{tpu_custom_call.1}
  #allocation0 [shape = 'u32[]', space=smem, size = 0x4, offset = 0x4, fixed_abs, tag = 'smem constant byte address 0x4 - core index']
  #allocation1 [shape = 'u32[144,128]{1,0:T(1,128)}', space=vmem, size = 0x12000, scoped, tag = 'internal scratch']
  %s0 = inlined_call_operand.vmem [shape: s32[8,1,1], index: 0, kind: input, shape index: {}]
  %s1 = inlined_call_operand.vmem [shape: f32[8,8,32], index: 1, kind: input, shape index: {}]
  %s2 = inlined_call_operand.vmem [shape: f32[32,128], index: 2, kind: input, shape index: {}]
  %s3 = inlined_call_operand.vmem [shape: f32[1,128], index: 3, kind: input, shape index: {}]
  %s4 = inlined_call_operand.vmem [shape: f32[128,16], index: 4, kind: input, shape index: {}]
  %s5 = inlined_call_operand.hbm [shape: f32[8,384], index: 5, kind: output, shape index: {}]
  %s6 = sld [smem:[#allocation0]]
  $region30: #{tpu_custom_call.1} parent=0
    _
  %s8 = ssub.s32 1, %s6
  %s9 = scalar_select 0, %s8, %s6
  $region1: #{tpu_custom_call.1} parent=0
    #allocation2 [shape = 'u8[12288]{0}', space=vmem, size = 0x3000, scoped, tag = 'output window, operand 0, single buffered']
    #allocation3 [shape = 's32[1]{0}', space=sflag, size = 0x4, scoped, tag = 'scoped memory for tpu_custom_call.1']
    %10 = vsyncpa [#allocation3], 0
    // Predicated region
    $region2: #{tpu_custom_call.1} parent=1 // pred_check
      _
    $region3: #{tpu_custom_call.1} parent=1 // pred_check_branch
      %12 = sbr.rel (0) target = $region5
    $region4: #{tpu_custom_call.1} parent=1 // pred_region
      _
    $region5: #{tpu_custom_call.1} parent=1 // pred_fallthru
      _
    // Predicated region
    $region6: #{tpu_custom_call.1} parent=1 // pred_check
      _
    $region7: #{tpu_custom_call.1} parent=1 // pred_check_branch
      %14 = sbr.rel (0) target = $region9
    $region8: #{tpu_custom_call.1} parent=1 // pred_region
      _
    $region9: #{tpu_custom_call.1} parent=1 // pred_fallthru
      _
    // Predicated region
    $region10: #{tpu_custom_call.1} parent=1 // pred_check
      _
    $region11: #{tpu_custom_call.1} parent=1 // pred_check_branch
      %16 = sbr.rel (0) target = $region13
    $region12: #{tpu_custom_call.1} parent=1 // pred_region
      _
    $region13: #{tpu_custom_call.1} parent=1 // pred_fallthru
      _
    // Predicated region
    $region14: #{tpu_custom_call.1} parent=1 // pred_check
      _
    $region15: #{tpu_custom_call.1} parent=1 // pred_check_branch
      %18 = sbr.rel (0) target = $region17
    $region16: #{tpu_custom_call.1} parent=1 // pred_region
      _
    $region17: #{tpu_custom_call.1} parent=1 // pred_fallthru
      _
    // Predicated region
    $region18: #{tpu_custom_call.1} parent=1 // pred_check
      _
    $region19: #{tpu_custom_call.1} parent=1 // pred_check_branch
      %20 = sbr.rel (0) target = $region21
    $region20: #{tpu_custom_call.1} parent=1 // pred_region
      _
    $region21: #{tpu_custom_call.1} parent=1 // pred_fallthru
      _
    %v21 = vld [vmem:[%s1] sm:$0xff]
    %v22 = vld [vmem:[%s1 + $0x8] sm:$0xff]
    %v23 = vld [vmem:[%s1 + $0x10] sm:$0xff]
    %v24 = vld [vmem:[%s1 + $0x18] sm:$0xff]
    %v25 = vld [vmem:[%s1 + $0x20] sm:$0xff]
    %v26 = vld [vmem:[%s1 + $0x28] sm:$0xff]
    %v27 = vld [vmem:[%s1 + $0x30] sm:$0xff]
    %v28 = vld [vmem:[%s1 + $0x38] sm:$0xff]
    %v29 = vld [vmem:[%s0] sm:$0x1]
    %v30 = vld [vmem:[%s0 + $0x1] sm:$0x1]
    %v31 = vld [vmem:[%s0 + $0x2] sm:$0x1]
    %v32 = vld [vmem:[%s0 + $0x3] sm:$0x1]
    %v33 = vld [vmem:[%s0 + $0x4] sm:$0x1]
    %v34 = vld [vmem:[%s0 + $0x5] sm:$0x1]
    %v35 = vld [vmem:[%s0 + $0x6] sm:$0x1]
    %v36 = vld [vmem:[%s0 + $0x7] sm:$0x1]
    %v37 = vlaneseq
    %v38 = vshrl.u32 %v37, 7
    %v39 = vlaneseq
    %v40 = vshrl.u32 %v39, 7
    %v41 = vsub.s32 0, %v40
    %v42 = vrot.slane %v29, %v41
    %v43 = vlaneseq
    %v44 = vshrl.u32 %v43, 7
    %v45 = vsub.s32 0, %v44
    %v46 = vrot.slane %v30, %v45
    %v47 = vlaneseq
    %v48 = vshrl.u32 %v47, 7
    %v49 = vsub.s32 0, %v48
    %v50 = vrot.slane %v31, %v49
    %v51 = vlaneseq
    %v52 = vshrl.u32 %v51, 7
    %v53 = vsub.s32 0, %v52
    %v54 = vrot.slane %v32, %v53
    %v55 = vlaneseq
    %v56 = vshrl.u32 %v55, 7
    %v57 = vsub.s32 0, %v56
    %v58 = vrot.slane %v33, %v57
    %v59 = vlaneseq
    %v60 = vshrl.u32 %v59, 7
    %v61 = vsub.s32 0, %v60
    %v62 = vrot.slane %v34, %v61
    %v63 = vlaneseq
    %v64 = vshrl.u32 %v63, 7
    %v65 = vsub.s32 0, %v64
    %v66 = vrot.slane %v35, %v65
    %v67 = vlaneseq
    %v68 = vshrl.u32 %v67, 7
    %v69 = vsub.s32 0, %v68
    %v70 = vrot.slane %v36, %v69
    %vm71 = vcmp.lt.s32.totalorder %v38, %v42
    %vm72 = vcmp.lt.s32.totalorder %v38, %v46
    %vm73 = vcmp.lt.s32.totalorder %v38, %v50
    %vm74 = vcmp.lt.s32.totalorder %v38, %v54
    %vm75 = vcmp.lt.s32.totalorder %v38, %v58
    %vm76 = vcmp.lt.s32.totalorder %v38, %v62
    %vm77 = vcmp.lt.s32.totalorder %v38, %v66
    %vm78 = vcmp.lt.s32.totalorder %v38, %v70
    %v79 = vsel %vm71, 1, 0
    %v80 = vsel %vm72, 1, 0
    %v81 = vsel %vm73, 1, 0
    %v82 = vsel %vm74, 1, 0
    %v83 = vsel %vm75, 1, 0
    %v84 = vsel %vm76, 1, 0
    %v85 = vsel %vm77, 1, 0
    %v86 = vsel %vm78, 1, 0
    %87 = vset.pattern.permute.xlu0 0
    %88 = vperm.xlu0 %87, %v79
    %v89 = vpop.permute.xlu0 %88
    %90 = vset.pattern.permute.xlu0 0
    %91 = vperm.xlu0 %90, %v80
    %v92 = vpop.permute.xlu0 %91
    %93 = vset.pattern.permute.xlu0 0
    %94 = vperm.xlu0 %93, %v81
    %v95 = vpop.permute.xlu0 %94
    %96 = vset.pattern.permute.xlu0 0
    %97 = vperm.xlu0 %96, %v82
    %v98 = vpop.permute.xlu0 %97
    %99 = vset.pattern.permute.xlu0 0
    %100 = vperm.xlu0 %99, %v83
    %v101 = vpop.permute.xlu0 %100
    %102 = vset.pattern.permute.xlu0 0
    %103 = vperm.xlu0 %102, %v84
    %v104 = vpop.permute.xlu0 %103
    %105 = vset.pattern.permute.xlu0 0
    %106 = vperm.xlu0 %105, %v85
    %v107 = vpop.permute.xlu0 %106
    %108 = vset.pattern.permute.xlu0 0
    %109 = vperm.xlu0 %108, %v86
    %v110 = vpop.permute.xlu0 %109
    %vm111 = vcmp.eq.s32.totalorder %v89, 1
    %vm112 = vcmp.eq.s32.totalorder %v92, 1
    %vm113 = vcmp.eq.s32.totalorder %v95, 1
    %vm114 = vcmp.eq.s32.totalorder %v98, 1
    %vm115 = vcmp.eq.s32.totalorder %v101, 1
    %vm116 = vcmp.eq.s32.totalorder %v104, 1
    %vm117 = vcmp.eq.s32.totalorder %v107, 1
    %vm118 = vcmp.eq.s32.totalorder %v110, 1
    %v119 = vsel %vm111, %v21, 0.0
    %v120 = vsel %vm112, %v22, 0.0
    %v121 = vsel %vm113, %v23, 0.0
    %v122 = vsel %vm114, %v24, 0.0
    %v123 = vsel %vm115, %v25, 0.0
    %v124 = vsel %vm116, %v26, 0.0
    %v125 = vsel %vm117, %v27, 0.0
    %v126 = vsel %vm118, %v28, 0.0
    %v127 = vcvt.s32.f32 %v79
    %v128 = vcvt.s32.f32 %v80
    %v129 = vcvt.s32.f32 %v81
    %v130 = vcvt.s32.f32 %v82
    %v131 = vcvt.s32.f32 %v83
    %v132 = vcvt.s32.f32 %v84
    %v133 = vcvt.s32.f32 %v85
    %v134 = vcvt.s32.f32 %v86
    %v135 = vld [vmem:[%s2] sm:$0xff]
    %v136 = vld [vmem:[%s2 + $0x8] sm:$0xff]
    %v137 = vld [vmem:[%s2 + $0x10] sm:$0xff]
    %v138 = vld [vmem:[%s2 + $0x18] sm:$0xff]
    %v139 = vld [vmem:[%s3] sm:$0x1]
    %v141 = vlaneseq
    %v142 = vshrl.u32 %v141, 7
    %v143 = vsub.s32 0, %v142
    %v144 = vrot.slane %v139, %v143
    %vm146 = vcmask 261120
    %v148 = vsel %vm146, %v119, 0
    %v151 = vsel %vm146, %v120, 0
    %v154 = vsel %vm146, %v121, 0
    %v157 = vsel %vm146, %v122, 0
    %v160 = vsel %vm146, %v123, 0
    %v163 = vsel %vm146, %v124, 0
    %v166 = vsel %vm146, %v125, 0
    %v169 = vsel %vm146, %v126, 0
    %171 = vmatprep.subr.mxu0 0.0
    %172 = vmatpush1.msra.mxu0 %v135
    %173 = vmatprep.subr.mxu0 0.0
    %174 = vmatpush1.msra.mxu0 %v136
    %175 = vmatprep.subr.mxu0 0.0
    %176 = vmatpush1.msra.mxu0 %v137
    %177 = vmatprep.subr.mxu0 0.0
    %178 = vmatpush1.msra.mxu0 %v138
    %179 = vmatprep.subr.mxu0 0.0
    %180 = vmatpush1.msra.mxu0 0.0
    %181 = vmatprep.subr.mxu0 0.0
    %182 = vmatpush1.msra.mxu0 0.0
    %183 = vmatprep.subr.mxu0 0.0
    %184 = vmatpush1.msra.mxu0 0.0
    %185 = vmatprep.subr.mxu0 0.0
    %186 = vmatpush1.msra.mxu0 0.0
    %187 = vmatprep.subr.mxu0 0.0
    %188 = vmatpush1.msra.mxu0 0.0
    %189 = vmatprep.subr.mxu0 0.0
    %190 = vmatpush1.msra.mxu0 0.0
    %191 = vmatprep.subr.mxu0 0.0
    %192 = vmatpush1.msra.mxu0 0.0
    %193 = vmatprep.subr.mxu0 0.0
    %194 = vmatpush1.msra.mxu0 0.0
    %195 = vmatprep.subr.mxu0 0.0
    %196 = vmatpush1.msra.mxu0 0.0
    %197 = vmatprep.subr.mxu0 0.0
    %198 = vmatpush1.msra.mxu0 0.0
    %199 = vmatprep.subr.mxu0 0.0
    %200 = vmatpush1.msra.mxu0 0.0
    %201 = vmatprep.subr.mxu0 0.0
    %202 = vmatpush1.msra.mxu0 0.0
    %203 = vmatprep.subr.mxu0 0.0
    %204 = vmatpush1.msra.mxu0 0.0
    %205 = vmatprep.subr.mxu0 0.0
    %206 = vmatpush1.msra.mxu0 0.0
    %207 = vmatprep.subr.mxu0 0.0
    %208 = vmatpush1.msra.mxu0 0.0
    %209 = vmatprep.subr.mxu0 0.0
    %210 = vmatpush1.msra.mxu0 0.0
    %211 = vmatprep.subr.mxu0 0.0
    %212 = vmatpush1.msra.mxu0 0.0
    %213 = vmatprep.subr.mxu0 0.0
    %214 = vmatpush1.msra.mxu0 0.0
    %215 = vmatprep.subr.mxu0 0.0
    %216 = vmatpush1.msra.mxu0 0.0
    %217 = vmatprep.subr.mxu0 0.0
    %218 = vmatpush1.msra.mxu0 0.0
    %219 = vmatprep.subr.mxu0 0.0
    %220 = vmatpush1.msra.mxu0 0.0
    %221 = vmatprep.subr.mxu0 0.0
    %222 = vmatpush1.msra.mxu0 0.0
    %223 = vmatprep.subr.mxu0 0.0
    %224 = vmatpush1.msra.mxu0 0.0
    %225 = vmatprep.subr.mxu0 0.0
    %226 = vmatpush1.msra.mxu0 0.0
    %227 = vmatprep.subr.mxu0 0.0
    %228 = vmatpush1.msra.mxu0 0.0
    %229 = vmatprep.subr.mxu0 0.0
    %230 = vmatpush1.msra.mxu0 0.0
    %231 = vmatprep.subr.mxu0 0.0
    %232 = vmatpush1.msra.mxu0 0.0
    %233 = vmatprep.subr.mxu0 0.0
    %234 = vmatpush1.msra.mxu0 0.0
    %235 = vmatprep.mubr.f32.mxu0 0.0
    %236 = vmatmul.mubr.f32.gmra.mrb[0].mxu0 %v148
    %v237 = vpop.f32.mrb[0].mxu0
    %v238 = vadd.f32 %v144, %v237
    %v239 = vpop.f32.mrb[0].mxu0
    %240 = vmatprep.mubr.f32.mxu0 0.0
    %241 = vmatmul.mubr.f32.gmra.mrb[0].mxu0 %v151
    %v242 = vpop.f32.mrb[0].mxu0
    %v243 = vadd.f32 %v144, %v242
    %v244 = vpop.f32.mrb[0].mxu0
    %245 = vmatprep.mubr.f32.mxu0 0.0
    %246 = vmatmul.mubr.f32.gmra.mrb[0].mxu0 %v154
    %v247 = vpop.f32.mrb[0].mxu0
    %v248 = vadd.f32 %v144, %v247
    %v249 = vpop.f32.mrb[0].mxu0
    %250 = vmatprep.mubr.f32.mxu0 0.0
    %251 = vmatmul.mubr.f32.gmra.mrb[0].mxu0 %v157
    %v252 = vpop.f32.mrb[0].mxu0
    %v253 = vadd.f32 %v144, %v252
    %v254 = vpop.f32.mrb[0].mxu0
    %255 = vmatprep.mubr.f32.mxu0 0.0
    %256 = vmatmul.mubr.f32.gmra.mrb[0].mxu0 %v160
    %v257 = vpop.f32.mrb[0].mxu0
    %v258 = vadd.f32 %v144, %v257
    %v259 = vpop.f32.mrb[0].mxu0
    %260 = vmatprep.mubr.f32.mxu0 0.0
    %261 = vmatmul.mubr.f32.gmra.mrb[0].mxu0 %v163
    %v262 = vpop.f32.mrb[0].mxu0
    %v263 = vadd.f32 %v144, %v262
    %v264 = vpop.f32.mrb[0].mxu0
    %265 = vmatprep.mubr.f32.mxu0 0.0
    %266 = vmatmul.mubr.f32.gmra.mrb[0].mxu0 %v166
    %v267 = vpop.f32.mrb[0].mxu0
    %v268 = vadd.f32 %v144, %v267
    %v269 = vpop.f32.mrb[0].mxu0
    %270 = vmatprep.mubr.f32.mxu0 0.0
    %271 = vmatmul.mubr.f32.gmra.mrb[0].mxu0 %v169
    %v272 = vpop.f32.mrb[0].mxu0
    %v273 = vadd.f32 %v144, %v272
    %v274 = vpop.f32.mrb[0].mxu0
    %275 = vdwg.mxu0
    %v276 = vmul.f32 %v238, %v238
    %v277 = vmul.f32 %v243, %v243
    %v278 = vmul.f32 %v248, %v248
    %v279 = vmul.f32 %v253, %v253
    %v280 = vmul.f32 %v258, %v258
    %v281 = vmul.f32 %v263, %v263
    %v282 = vmul.f32 %v268, %v268
    %v283 = vmul.f32 %v273, %v273
    %284 = vadd.xlane.f32.xlu0 %v276
    %v285 = vpop.xlane.xlu0 %284
    %286 = vadd.xlane.f32.xlu0 %v277
    %v287 = vpop.xlane.xlu0 %286
    %288 = vadd.xlane.f32.xlu0 %v278
    %v289 = vpop.xlane.xlu0 %288
    %290 = vadd.xlane.f32.xlu0 %v279
    %v291 = vpop.xlane.xlu0 %290
    %292 = vadd.xlane.f32.xlu0 %v280
    %v293 = vpop.xlane.xlu0 %292
    %294 = vadd.xlane.f32.xlu0 %v281
    %v295 = vpop.xlane.xlu0 %294
    %296 = vadd.xlane.f32.xlu0 %v282
    %v297 = vpop.xlane.xlu0 %296
    %298 = vadd.xlane.f32.xlu0 %v283
    %v299 = vpop.xlane.xlu0 %298
    %v300 = vmax.f32 %v285, 1e-24
    %v301 = vmax.f32 %v287, 1e-24
    %v302 = vmax.f32 %v289, 1e-24
    %v303 = vmax.f32 %v291, 1e-24
    %v304 = vmax.f32 %v293, 1e-24
    %v305 = vmax.f32 %v295, 1e-24
    %v306 = vmax.f32 %v297, 1e-24
    %v307 = vmax.f32 %v299, 1e-24
    %v308 = vrsqrt.pop %v300
    %v309 = vrsqrt.pop %v301
    %v310 = vrsqrt.pop %v302
    %v311 = vrsqrt.pop %v303
    %v312 = vrsqrt.pop %v304
    %v313 = vrsqrt.pop %v305
    %v314 = vrsqrt.pop %v306
    %v315 = vrsqrt.pop %v307
    %v316 = vmul.f32 %v238, %v308
    %v317 = vmul.f32 %v243, %v309
    %v318 = vmul.f32 %v248, %v310
    %v319 = vmul.f32 %v253, %v311
    %v320 = vmul.f32 %v258, %v312
    %v321 = vmul.f32 %v263, %v313
    %v322 = vmul.f32 %v268, %v314
    %v323 = vmul.f32 %v273, %v315
    %v324 = vld [vmem:[%s4] sm:$0xff]
    %v325 = vld [vmem:[%s4 + $0x8] sm:$0xff]
    %v326 = vld [vmem:[%s4 + $0x10] sm:$0xff]
    %v327 = vld [vmem:[%s4 + $0x18] sm:$0xff]
    %v328 = vld [vmem:[%s4 + $0x20] sm:$0xff]
    %v329 = vld [vmem:[%s4 + $0x28] sm:$0xff]
    %v330 = vld [vmem:[%s4 + $0x30] sm:$0xff]
    %v331 = vld [vmem:[%s4 + $0x38] sm:$0xff]
    %v332 = vld [vmem:[%s4 + $0x40] sm:$0xff]
    %v333 = vld [vmem:[%s4 + $0x48] sm:$0xff]
    %v334 = vld [vmem:[%s4 + $0x50] sm:$0xff]
    %v335 = vld [vmem:[%s4 + $0x58] sm:$0xff]
    %v336 = vld [vmem:[%s4 + $0x60] sm:$0xff]
    %v337 = vld [vmem:[%s4 + $0x68] sm:$0xff]
    %v338 = vld [vmem:[%s4 + $0x70] sm:$0xff]
    %v339 = vld [vmem:[%s4 + $0x78] sm:$0xff]
    %340 = vmatprep.subr.mxu0 0.0
    %341 = vmatpush1.msra.mxu0 %v324
    %342 = vmatprep.subr.mxu0 0.0
    %343 = vmatpush1.msra.mxu0 %v325
    %344 = vmatprep.subr.mxu0 0.0
    %345 = vmatpush1.msra.mxu0 %v326
    %346 = vmatprep.subr.mxu0 0.0
    %347 = vmatpush1.msra.mxu0 %v327
    %348 = vmatprep.subr.mxu0 0.0
    %349 = vmatpush1.msra.mxu0 %v328
    %350 = vmatprep.subr.mxu0 0.0
    %351 = vmatpush1.msra.mxu0 %v329
    %352 = vmatprep.subr.mxu0 0.0
    %353 = vmatpush1.msra.mxu0 %v330
    %354 = vmatprep.subr.mxu0 0.0
    %355 = vmatpush1.msra.mxu0 %v331
    %356 = vmatprep.subr.mxu0 0.0
    %357 = vmatpush1.msra.mxu0 %v332
    %358 = vmatprep.subr.mxu0 0.0
    %359 = vmatpush1.msra.mxu0 %v333
    %360 = vmatprep.subr.mxu0 0.0
    %361 = vmatpush1.msra.mxu0 %v334
    %362 = vmatprep.subr.mxu0 0.0
    %363 = vmatpush1.msra.mxu0 %v335
    %364 = vmatprep.subr.mxu0 0.0
    %365 = vmatpush1.msra.mxu0 %v336
    %366 = vmatprep.subr.mxu0 0.0
    %367 = vmatpush1.msra.mxu0 %v337
    %368 = vmatprep.subr.mxu0 0.0
    %369 = vmatpush1.msra.mxu0 %v338
    %370 = vmatprep.subr.mxu0 0.0
    %371 = vmatpush1.msra.mxu0 %v339
    %372 = vmatprep.subr.mxu0 0.0
    %373 = vmatpush1.msra.mxu0 0.0
    %374 = vmatprep.subr.mxu0 0.0
    %375 = vmatpush1.msra.mxu0 0.0
    %376 = vmatprep.subr.mxu0 0.0
    %377 = vmatpush1.msra.mxu0 0.0
    %378 = vmatprep.subr.mxu0 0.0
    %379 = vmatpush1.msra.mxu0 0.0
    %380 = vmatprep.subr.mxu0 0.0
    %381 = vmatpush1.msra.mxu0 0.0
    %382 = vmatprep.subr.mxu0 0.0
    %383 = vmatpush1.msra.mxu0 0.0
    %384 = vmatprep.subr.mxu0 0.0
    %385 = vmatpush1.msra.mxu0 0.0
    %386 = vmatprep.subr.mxu0 0.0
    %387 = vmatpush1.msra.mxu0 0.0
    %388 = vmatprep.subr.mxu0 0.0
    %389 = vmatpush1.msra.mxu0 0.0
    %390 = vmatprep.subr.mxu0 0.0
    %391 = vmatpush1.msra.mxu0 0.0
    %392 = vmatprep.subr.mxu0 0.0
    %393 = vmatpush1.msra.mxu0 0.0
    %394 = vmatprep.subr.mxu0 0.0
    %395 = vmatpush1.msra.mxu0 0.0
    %396 = vmatprep.subr.mxu0 0.0
    %397 = vmatpush1.msra.mxu0 0.0
    %398 = vmatprep.subr.mxu0 0.0
    %399 = vmatpush1.msra.mxu0 0.0
    %400 = vmatprep.subr.mxu0 0.0
    %401 = vmatpush1.msra.mxu0 0.0
    %402 = vmatprep.subr.mxu0 0.0
    %403 = vmatpush1.msra.mxu0 0.0
    %404 = vmatprep.mubr.f32.mxu0 0.0
    %405 = vmatmul.mubr.f32.gmra.mrb[0].mxu0 %v316
    %v406 = vpop.f32.mrb[0].mxu0
    %v407 = vadd.f32 0.0, %v406
    %v408 = vpop.f32.mrb[0].mxu0
    %409 = vmatprep.mubr.f32.mxu0 0.0
    %410 = vmatmul.mubr.f32.gmra.mrb[0].mxu0 %v317
    %v411 = vpop.f32.mrb[0].mxu0
    %v412 = vadd.f32 0.0, %v411
    %v413 = vpop.f32.mrb[0].mxu0
    %414 = vmatprep.mubr.f32.mxu0 0.0
    %415 = vmatmul.mubr.f32.gmra.mrb[0].mxu0 %v318
    %v416 = vpop.f32.mrb[0].mxu0
    %v417 = vadd.f32 0.0, %v416
    %v418 = vpop.f32.mrb[0].mxu0
    %419 = vmatprep.mubr.f32.mxu0 0.0
    %420 = vmatmul.mubr.f32.gmra.mrb[0].mxu0 %v319
    %v421 = vpop.f32.mrb[0].mxu0
    %v422 = vadd.f32 0.0, %v421
    %v423 = vpop.f32.mrb[0].mxu0
    %424 = vmatprep.mubr.f32.mxu0 0.0
    %425 = vmatmul.mubr.f32.gmra.mrb[0].mxu0 %v320
    %v426 = vpop.f32.mrb[0].mxu0
    %v427 = vadd.f32 0.0, %v426
    %v428 = vpop.f32.mrb[0].mxu0
    %429 = vmatprep.mubr.f32.mxu0 0.0
    %430 = vmatmul.mubr.f32.gmra.mrb[0].mxu0 %v321
    %v431 = vpop.f32.mrb[0].mxu0
    %v432 = vadd.f32 0.0, %v431
    %v433 = vpop.f32.mrb[0].mxu0
    %434 = vmatprep.mubr.f32.mxu0 0.0
    %435 = vmatmul.mubr.f32.gmra.mrb[0].mxu0 %v322
    %v436 = vpop.f32.mrb[0].mxu0
    %v437 = vadd.f32 0.0, %v436
    %v438 = vpop.f32.mrb[0].mxu0
    %439 = vmatprep.mubr.f32.mxu0 0.0
    %440 = vmatmul.mubr.f32.gmra.mrb[0].mxu0 %v323
    %v441 = vpop.f32.mrb[0].mxu0
    %v442 = vadd.f32 0.0, %v441
    %v443 = vpop.f32.mrb[0].mxu0
    %444 = vdwg.mxu0
    %v445 = vsel %vm111, %v407, 0.0
    %v446 = vsel %vm112, %v412, 0.0
    %v447 = vsel %vm113, %v417, 0.0
    %v448 = vsel %vm114, %v422, 0.0
    %v449 = vsel %vm115, %v427, 0.0
    %v450 = vsel %vm116, %v432, 0.0
    %v451 = vsel %vm117, %v437, 0.0
    %v452 = vsel %vm118, %v442, 0.0
    %vm453 = vcmask 130048
    %v454 = vsel %vm453, %v445, 0.0
    %v455 = vrot.slane %v454, 4
    %v456 = vadd.f32 %v454, %v455
    %v457 = vrot.slane %v456, 2
    %v458 = vadd.f32 %v456, %v457
    %v459 = vrot.slane %v458, 1
    %v460 = vadd.f32 %v458, %v459
    %v461 = vsel %vm453, %v446, 0.0
    %v462 = vrot.slane %v461, 4
    %v463 = vadd.f32 %v461, %v462
    %v464 = vrot.slane %v463, 2
    %v465 = vadd.f32 %v463, %v464
    %v466 = vrot.slane %v465, 1
    %v467 = vadd.f32 %v465, %v466
    %v468 = vsel %vm453, %v447, 0.0
    %v469 = vrot.slane %v468, 4
    %v470 = vadd.f32 %v468, %v469
    %v471 = vrot.slane %v470, 2
    %v472 = vadd.f32 %v470, %v471
    %v473 = vrot.slane %v472, 1
    %v474 = vadd.f32 %v472, %v473
    %v475 = vsel %vm453, %v448, 0.0
    %v476 = vrot.slane %v475, 4
    %v477 = vadd.f32 %v475, %v476
    %v478 = vrot.slane %v477, 2
    %v479 = vadd.f32 %v477, %v478
    %v480 = vrot.slane %v479, 1
    %v481 = vadd.f32 %v479, %v480
    %v482 = vsel %vm453, %v449, 0.0
    %v483 = vrot.slane %v482, 4
    %v484 = vadd.f32 %v482, %v483
    %v485 = vrot.slane %v484, 2
    %v486 = vadd.f32 %v484, %v485
    %v487 = vrot.slane %v486, 1
    %v488 = vadd.f32 %v486, %v487
    %v489 = vsel %vm453, %v450, 0.0
    %v490 = vrot.slane %v489, 4
    %v491 = vadd.f32 %v489, %v490
    %v492 = vrot.slane %v491, 2
    %v493 = vadd.f32 %v491, %v492
    %v494 = vrot.slane %v493, 1
    %v495 = vadd.f32 %v493, %v494
    %v496 = vsel %vm453, %v451, 0.0
    %v497 = vrot.slane %v496, 4
    %v498 = vadd.f32 %v496, %v497
    %v499 = vrot.slane %v498, 2
    %v500 = vadd.f32 %v498, %v499
    %v501 = vrot.slane %v500, 1
    %v502 = vadd.f32 %v500, %v501
    %v503 = vsel %vm453, %v452, 0.0
    %v504 = vrot.slane %v503, 4
    %v505 = vadd.f32 %v503, %v504
    %v506 = vrot.slane %v505, 2
    %v507 = vadd.f32 %v505, %v506
    %v508 = vrot.slane %v507, 1
    %v509 = vadd.f32 %v507, %v508
    %v510 = vcvt.s32.f32 %v29
    %v511 = vcvt.s32.f32 %v30
    %v512 = vcvt.s32.f32 %v31
    %v513 = vcvt.s32.f32 %v32
    %v514 = vcvt.s32.f32 %v33
    %v515 = vcvt.s32.f32 %v34
    %v516 = vcvt.s32.f32 %v35
    %v517 = vcvt.s32.f32 %v36
    %v518 = vmax.f32 %v510, 1.0
    %v519 = vmax.f32 %v511, 1.0
    %v520 = vmax.f32 %v512, 1.0
    %v521 = vmax.f32 %v513, 1.0
    %v522 = vmax.f32 %v514, 1.0
    %v523 = vmax.f32 %v515, 1.0
    %v524 = vmax.f32 %v516, 1.0
    %v525 = vmax.f32 %v517, 1.0
    %v526 = vrcp.pop %v518
    %v527 = vmul.f32 1.0, %v526
    %v528 = vrcp.pop %v519
    %v529 = vmul.f32 1.0, %v528
    %v530 = vrcp.pop %v520
    %v531 = vmul.f32 1.0, %v530
    %v532 = vrcp.pop %v521
    %v533 = vmul.f32 1.0, %v532
    %v534 = vrcp.pop %v522
    %v535 = vmul.f32 1.0, %v534
    %v536 = vrcp.pop %v523
    %v537 = vmul.f32 1.0, %v536
    %v538 = vrcp.pop %v524
    %v539 = vmul.f32 1.0, %v538
    %v540 = vrcp.pop %v525
    %v541 = vmul.f32 1.0, %v540
    %v542 = vsel %vm146, %v119, 0.0
    %v543 = vrot.slane %v542, 4
    %v544 = vadd.f32 %v542, %v543
    %v545 = vrot.slane %v544, 2
    %v546 = vadd.f32 %v544, %v545
    %v547 = vrot.slane %v546, 1
    %v548 = vadd.f32 %v546, %v547
    %v549 = vsel %vm146, %v120, 0.0
    %v550 = vrot.slane %v549, 4
    %v551 = vadd.f32 %v549, %v550
    %v552 = vrot.slane %v551, 2
    %v553 = vadd.f32 %v551, %v552
    %v554 = vrot.slane %v553, 1
    %v555 = vadd.f32 %v553, %v554
    %v556 = vsel %vm146, %v121, 0.0
    %v557 = vrot.slane %v556, 4
    %v558 = vadd.f32 %v556, %v557
    %v559 = vrot.slane %v558, 2
    %v560 = vadd.f32 %v558, %v559
    %v561 = vrot.slane %v560, 1
    %v562 = vadd.f32 %v560, %v561
    %v563 = vsel %vm146, %v122, 0.0
    %v564 = vrot.slane %v563, 4
    %v565 = vadd.f32 %v563, %v564
    %v566 = vrot.slane %v565, 2
    %v567 = vadd.f32 %v565, %v566
    %v568 = vrot.slane %v567, 1
    %v569 = vadd.f32 %v567, %v568
    %v570 = vsel %vm146, %v123, 0.0
    %v571 = vrot.slane %v570, 4
    %v572 = vadd.f32 %v570, %v571
    %v573 = vrot.slane %v572, 2
    %v574 = vadd.f32 %v572, %v573
    %v575 = vrot.slane %v574, 1
    %v576 = vadd.f32 %v574, %v575
    %v577 = vsel %vm146, %v124, 0.0
    %v578 = vrot.slane %v577, 4
    %v579 = vadd.f32 %v577, %v578
    %v580 = vrot.slane %v579, 2
    %v581 = vadd.f32 %v579, %v580
    %v582 = vrot.slane %v581, 1
    %v583 = vadd.f32 %v581, %v582
    %v584 = vsel %vm146, %v125, 0.0
    %v585 = vrot.slane %v584, 4
    %v586 = vadd.f32 %v584, %v585
    %v587 = vrot.slane %v586, 2
    %v588 = vadd.f32 %v586, %v587
    %v589 = vrot.slane %v588, 1
    %v590 = vadd.f32 %v588, %v589
    %v591 = vsel %vm146, %v126, 0.0
    %v592 = vrot.slane %v591, 4
    %v593 = vadd.f32 %v591, %v592
    %v594 = vrot.slane %v593, 2
    %v595 = vadd.f32 %v593, %v594
    %v596 = vrot.slane %v595, 1
    %v597 = vadd.f32 %v595, %v596
    %599 = vset.pattern.permute.xlu0 0
    %600 = vperm.xlu0 %599, %v527
    %v601 = vpop.permute.xlu0 %600
    %v603 = vlaneseq
    %v604 = vshrl.u32 %v603, 7
    %v605 = vsub.s32 0, %v604
    %v606 = vrot.slane %v601, %v605
    %608 = vset.pattern.permute.xlu0 0
    %609 = vperm.xlu0 %608, %v529
    %v610 = vpop.permute.xlu0 %609
    %v612 = vlaneseq
    %v613 = vshrl.u32 %v612, 7
    %v614 = vsub.s32 0, %v613
    %v615 = vrot.slane %v610, %v614
    %617 = vset.pattern.permute.xlu0 0
    %618 = vperm.xlu0 %617, %v531
    %v619 = vpop.permute.xlu0 %618
    %v621 = vlaneseq
    %v622 = vshrl.u32 %v621, 7
    %v623 = vsub.s32 0, %v622
    %v624 = vrot.slane %v619, %v623
    %626 = vset.pattern.permute.xlu0 0
    %627 = vperm.xlu0 %626, %v533
    %v628 = vpop.permute.xlu0 %627
    %v630 = vlaneseq
    %v631 = vshrl.u32 %v630, 7
    %v632 = vsub.s32 0, %v631
    %v633 = vrot.slane %v628, %v632
    %635 = vset.pattern.permute.xlu0 0
    %636 = vperm.xlu0 %635, %v535
    %v637 = vpop.permute.xlu0 %636
    %v639 = vlaneseq
    %v640 = vshrl.u32 %v639, 7
    %v641 = vsub.s32 0, %v640
    %v642 = vrot.slane %v637, %v641
    %644 = vset.pattern.permute.xlu0 0
    %645 = vperm.xlu0 %644, %v537
    %v646 = vpop.permute.xlu0 %645
    %v648 = vlaneseq
    %v649 = vshrl.u32 %v648, 7
    %v650 = vsub.s32 0, %v649
    %v651 = vrot.slane %v646, %v650
    %653 = vset.pattern.permute.xlu0 0
    %654 = vperm.xlu0 %653, %v539
    %v655 = vpop.permute.xlu0 %654
    %v657 = vlaneseq
    %v658 = vshrl.u32 %v657, 7
    %v659 = vsub.s32 0, %v658
    %v660 = vrot.slane %v655, %v659
    %662 = vset.pattern.permute.xlu0 0
    %663 = vperm.xlu0 %662, %v541
    %v664 = vpop.permute.xlu0 %663
    %v666 = vlaneseq
    %v667 = vshrl.u32 %v666, 7
    %v668 = vsub.s32 0, %v667
    %v669 = vrot.slane %v664, %v668
    %v670 = vmul.f32 %v548, %v606
    %v671 = vmul.f32 %v555, %v615
    %v672 = vmul.f32 %v562, %v624
    %v673 = vmul.f32 %v569, %v633
    %v674 = vmul.f32 %v576, %v642
    %v675 = vmul.f32 %v583, %v651
    %v676 = vmul.f32 %v590, %v660
    %v677 = vmul.f32 %v597, %v669
    %v678 = vlaneseq
    %v679 = vshrl.u32 %v678, 7
    %v680 = vsub.s32 0, %v679
    %v681 = vrot.slane %v670, %v680
    %v682 = vlaneseq
    %v683 = vshrl.u32 %v682, 7
    %v684 = vsub.s32 0, %v683
    %v685 = vrot.slane %v671, %v684
    %v686 = vlaneseq
    %v687 = vshrl.u32 %v686, 7
    %v688 = vsub.s32 0, %v687
    %v689 = vrot.slane %v672, %v688
    %v690 = vlaneseq
    %v691 = vshrl.u32 %v690, 7
    %v692 = vsub.s32 0, %v691
    %v693 = vrot.slane %v673, %v692
    %v694 = vlaneseq
    %v695 = vshrl.u32 %v694, 7
    %v696 = vsub.s32 0, %v695
    %v697 = vrot.slane %v674, %v696
    %v698 = vlaneseq
    %v699 = vshrl.u32 %v698, 7
    %v700 = vsub.s32 0, %v699
    %v701 = vrot.slane %v675, %v700
    %v702 = vlaneseq
    %v703 = vshrl.u32 %v702, 7
    %v704 = vsub.s32 0, %v703
    %v705 = vrot.slane %v676, %v704
    %v706 = vlaneseq
    %v707 = vshrl.u32 %v706, 7
    %v708 = vsub.s32 0, %v707
    %v709 = vrot.slane %v677, %v708
    %v710 = vsub.f32 %v119, %v681
    %v711 = vsub.f32 %v120, %v685
    %v712 = vsub.f32 %v121, %v689
    %v713 = vsub.f32 %v122, %v693
    %v714 = vsub.f32 %v123, %v697
    %v715 = vsub.f32 %v124, %v701
    %v716 = vsub.f32 %v125, %v705
    %v717 = vsub.f32 %v126, %v709
    %719 = vset.pattern.permute.xlu0 0
    %720 = vperm.xlu0 %719, %v127
    %v721 = vpop.permute.xlu0 %720
    %724 = vset.pattern.permute.xlu0 0
    %725 = vperm.xlu0 %724, %v128
    %v726 = vpop.permute.xlu0 %725
    %729 = vset.pattern.permute.xlu0 0
    %730 = vperm.xlu0 %729, %v129
    %v731 = vpop.permute.xlu0 %730
    %734 = vset.pattern.permute.xlu0 0
    %735 = vperm.xlu0 %734, %v130
    %v736 = vpop.permute.xlu0 %735
    %739 = vset.pattern.permute.xlu0 0
    %740 = vperm.xlu0 %739, %v131
    %v741 = vpop.permute.xlu0 %740
    %744 = vset.pattern.permute.xlu0 0
    %745 = vperm.xlu0 %744, %v132
    %v746 = vpop.permute.xlu0 %745
    %749 = vset.pattern.permute.xlu0 0
    %750 = vperm.xlu0 %749, %v133
    %v751 = vpop.permute.xlu0 %750
    %754 = vset.pattern.permute.xlu0 0
    %755 = vperm.xlu0 %754, %v134
    %v756 = vpop.permute.xlu0 %755
    %v758 = vmul.f32 %v710, %v721
    %v759 = vmul.f32 %v711, %v726
    %v760 = vmul.f32 %v712, %v731
    %v761 = vmul.f32 %v713, %v736
    %v762 = vmul.f32 %v714, %v741
    %v763 = vmul.f32 %v715, %v746
    %v764 = vmul.f32 %v716, %v751
    %v765 = vmul.f32 %v717, %v756
    %v766 = vmul.f32 %v758, %v758
    %v767 = vmul.f32 %v759, %v759
    %v768 = vmul.f32 %v760, %v760
    %v769 = vmul.f32 %v761, %v761
    %v770 = vmul.f32 %v762, %v762
    %v771 = vmul.f32 %v763, %v763
    %v772 = vmul.f32 %v764, %v764
    %v773 = vmul.f32 %v765, %v765
    %v774 = vsel %vm146, %v766, 0.0
    %v775 = vrot.slane %v774, 4
    %v776 = vadd.f32 %v774, %v775
    %v777 = vrot.slane %v776, 2
    %v778 = vadd.f32 %v776, %v777
    %v779 = vrot.slane %v778, 1
    %v780 = vadd.f32 %v778, %v779
    %v781 = vsel %vm146, %v767, 0.0
    %v782 = vrot.slane %v781, 4
    %v783 = vadd.f32 %v781, %v782
    %v784 = vrot.slane %v783, 2
    %v785 = vadd.f32 %v783, %v784
    %v786 = vrot.slane %v785, 1
    %v787 = vadd.f32 %v785, %v786
    %v788 = vsel %vm146, %v768, 0.0
    %v789 = vrot.slane %v788, 4
    %v790 = vadd.f32 %v788, %v789
    %v791 = vrot.slane %v790, 2
    %v792 = vadd.f32 %v790, %v791
    %v793 = vrot.slane %v792, 1
    %v794 = vadd.f32 %v792, %v793
    %v795 = vsel %vm146, %v769, 0.0
    %v796 = vrot.slane %v795, 4
    %v797 = vadd.f32 %v795, %v796
    %v798 = vrot.slane %v797, 2
    %v799 = vadd.f32 %v797, %v798
    %v800 = vrot.slane %v799, 1
    %v801 = vadd.f32 %v799, %v800
    %v802 = vsel %vm146, %v770, 0.0
    %v803 = vrot.slane %v802, 4
    %v804 = vadd.f32 %v802, %v803
    %v805 = vrot.slane %v804, 2
    %v806 = vadd.f32 %v804, %v805
    %v807 = vrot.slane %v806, 1
    %v808 = vadd.f32 %v806, %v807
    %v809 = vsel %vm146, %v771, 0.0
    %v810 = vrot.slane %v809, 4
    %v811 = vadd.f32 %v809, %v810
    %v812 = vrot.slane %v811, 2
    %v813 = vadd.f32 %v811, %v812
    %v814 = vrot.slane %v813, 1
    %v815 = vadd.f32 %v813, %v814
    %v816 = vsel %vm146, %v772, 0.0
    %v817 = vrot.slane %v816, 4
    %v818 = vadd.f32 %v816, %v817
    %v819 = vrot.slane %v818, 2
    %v820 = vadd.f32 %v818, %v819
    %v821 = vrot.slane %v820, 1
    %v822 = vadd.f32 %v820, %v821
    %v823 = vsel %vm146, %v773, 0.0
    %v824 = vrot.slane %v823, 4
    %v825 = vadd.f32 %v823, %v824
    %v826 = vrot.slane %v825, 2
    %v827 = vadd.f32 %v825, %v826
    %v828 = vrot.slane %v827, 1
    %v829 = vadd.f32 %v827, %v828
    %v830 = vmul.f32 %v780, %v606
    %v831 = vmul.f32 %v787, %v615
    %v832 = vmul.f32 %v794, %v624
    %v833 = vmul.f32 %v801, %v633
    %v834 = vmul.f32 %v808, %v642
    %v835 = vmul.f32 %v815, %v651
    %v836 = vmul.f32 %v822, %v660
    %v837 = vmul.f32 %v829, %v669
    %838 = vst [vmem:[#allocation2] sm:$0xff] 0.0
    %839 = vst [vmem:[#allocation2 + $0x8] sm:$0xff] 0.0
    %840 = vst [vmem:[#allocation2 + $0x10] sm:$0xff] 0.0
    %vm849 = vcmask 1041409
    %v850 = vsel %vm849, %v467, %v460
    %vm851 = vcmask 1042434
    %v852 = vsel %vm851, %v474, %v850
    %vm853 = vcmask 1043459
    %v854 = vsel %vm853, %v481, %v852
    %vm855 = vcmask 1044484
    %v856 = vsel %vm855, %v488, %v854
    %vm857 = vcmask 1045509
    %v858 = vsel %vm857, %v495, %v856
    %vm859 = vcmask 1046534
    %v860 = vsel %vm859, %v502, %v858
    %vm861 = vcmask 1047559
    %v862 = vsel %vm861, %v509, %v860
    %864 = vst.msk [vmem:[#allocation2] sm:$0xff] %vm453, %v862
    %v873 = vrot.slane %v671, 7
    %v874 = vsel %vm849, %v873, %v670
    %v875 = vrot.slane %v672, 6
    %v876 = vsel %vm851, %v875, %v874
    %v877 = vrot.slane %v673, 5
    %v878 = vsel %vm853, %v877, %v876
    %v879 = vrot.slane %v674, 4
    %v880 = vsel %vm855, %v879, %v878
    %v881 = vrot.slane %v675, 3
    %v882 = vsel %vm857, %v881, %v880
    %v883 = vrot.slane %v676, 2
    %v884 = vsel %vm859, %v883, %v882
    %v885 = vrot.slane %v677, 1
    %v886 = vsel %vm861, %v885, %v884
    %888 = vst.msk [vmem:[#allocation2 + $0x8] sm:$0xff] %vm146, %v886
    %v897 = vrot.slane %v831, 7
    %v898 = vsel %vm849, %v897, %v830
    %v899 = vrot.slane %v832, 6
    %v900 = vsel %vm851, %v899, %v898
    %v901 = vrot.slane %v833, 5
    %v902 = vsel %vm853, %v901, %v900
    %v903 = vrot.slane %v834, 4
    %v904 = vsel %vm855, %v903, %v902
    %v905 = vrot.slane %v835, 3
    %v906 = vsel %vm857, %v905, %v904
    %v907 = vrot.slane %v836, 2
    %v908 = vsel %vm859, %v907, %v906
    %v909 = vrot.slane %v837, 1
    %v910 = vsel %vm861, %v909, %v908
    %912 = vst.msk [vmem:[#allocation2 + $0x10] sm:$0xff] %vm146, %v910
    // Predicated region
    $region22: #{tpu_custom_call.1} parent=1 // pred_check
      _
    $region23: #{tpu_custom_call.1} parent=1 // pred_check_branch
      %914 = sbr.rel (0) target = $region25
    $region24: #{tpu_custom_call.1} parent=1 // pred_region
      %s916 = ssub.s32 384, 384
      %917 = vsyncadd [#allocation3], %s916
      %s919 = sshll.u32 [#allocation2], 4
      %s920 = int_to_ptr.vmem [resolvable:$true] %s919
      %922 = dma.vmem_to_hbm [thread:$0]  %s920, 384, %s5, [#allocation3]
    $region25: #{tpu_custom_call.1} parent=1 // pred_fallthru
      _
    // Predicated region
    $region26: #{tpu_custom_call.1} parent=1 // pred_check
      _
    $region27: #{tpu_custom_call.1} parent=1 // pred_check_branch
      %924 = sbr.rel (0) target = $region29
    $region28: #{tpu_custom_call.1} parent=1 // pred_region
      %925 = dma.done [#allocation3], 384
    $region29: #{tpu_custom_call.1} parent=1 // pred_fallthru
      _
    %926 = vsyncpa [#allocation3], 1

</llo_original>
